<compile_context>
chip_gen: v7x
topology: tpu7x:2x2x1
jax: 0.10.0
libtpu: 0.0.40
codegen_flags: <defaults>
</compile_context>

<pallas_src>
import functools

import jax
import jax.numpy as jnp
from jax.experimental import pallas as pl
from jax.experimental.pallas import tpu as pltpu

_NEG = -1e30  # mask value for out-of-range class lanes: exp(_NEG - m) == 0


def _lse_kernel(x_ref, out_ref, m_sc, l_sc, *, c_total, tile_c, need_class_mask):
    """Online (streaming) per-row logsumexp over class tiles (reduction axis = grid axis 1)."""
    k = pl.program_id(1)
    nk = pl.num_programs(1)

    @pl.when(k == 0)
    def _():
        m_sc[...] = jnp.full_like(m_sc, _NEG)
        l_sc[...] = jnp.zeros_like(l_sc)

    x = x_ref[...]  # native HBM dtype (bf16 stays packed for the max reduce)
    if need_class_mask:
        # Only the last class tile can contain lanes past C; comparing against the scalar
        # remaining width makes earlier tiles an all-true select.
        col = jax.lax.broadcasted_iota(jnp.int32, x.shape, 1)
        x = jnp.where(col < (c_total - k * tile_c), x, jnp.asarray(_NEG, x.dtype))

    row_max = jnp.max(x, axis=-1, keepdims=True).astype(jnp.float32)
    m_prev = m_sc[...]
    m_new = jnp.maximum(m_prev, row_max)
    # f32 upcast fused into the exp argument (no separate full-tile f32 copy).
    p_sum = jnp.sum(jnp.exp(x.astype(jnp.float32) - m_new), axis=-1, keepdims=True)
    l_sc[...] = jnp.exp(m_prev - m_new) * l_sc[...] + p_sum
    m_sc[...] = m_new

    @pl.when(k == nk - 1)
    def _():
        # Rows past N in the last (ragged) batch tile are dropped by Pallas on writeback.
        out_ref[...] = m_sc[...] + jnp.log(l_sc[...])


def _row_logsumexp(x):
    """Per-row logsumexp of an (N, C) logits array via a tiled Pallas TPU kernel."""
    n, c = x.shape
    itemsize = jnp.dtype(x.dtype).itemsize

    # ---- class tile: multiple of 128, never wider than the array (ragged tail masked) ----
    if c <= 128:
        tile_c = c                      # block == full class dim -> no out-of-range lanes
        need_class_mask = False
    else:
        tile_c = min(4096, (c // 128) * 128)
        need_class_mask = (c % tile_c) != 0

    # ---- batch tile: ~1M elements per block (2 MiB bf16 / 4 MiB f32) to amortize the
    # per-grid-step overhead; multiple of 8, never taller than the array. ----
    if n < 8:
        tile_n = n                      # block == full batch dim
    else:
        rows = max(8, (1 << 20) // tile_c)
        tile_n = min(rows, (n // 8) * 8, 1024)
        tile_n = max(8, (tile_n // 8) * 8)
        # Keep >= 2 batch tiles when possible so the "parallel" axis can use both
        # TensorCores on v7x (no effect on single-TC v5e/v6e).
        if n >= 16 and pl.cdiv(n, tile_n) < 2:
            tile_n = max(8, (((n + 1) // 2) // 8) * 8)

    grid = (pl.cdiv(n, tile_n), pl.cdiv(c, tile_c))

    # ---- VMEM headroom (capped to device capacity; v7x only has 64 MiB per TC) ----
    vmem_limit = 64 * 1024 * 1024
    try:
        cap = int(pltpu.get_tpu_info().vmem_capacity_bytes)
        vmem_limit = min(vmem_limit, cap * 3 // 4)
    except Exception:
        pass

    cost = pl.CostEstimate(
        flops=int(4 * n * c),
        transcendentals=int(n * c),
        bytes_accessed=int(n * c * itemsize + n * 4),
    )

    kernel = functools.partial(
        _lse_kernel, c_total=c, tile_c=tile_c, need_class_mask=need_class_mask
    )

    out = pl.pallas_call(
        kernel,
        out_shape=jax.ShapeDtypeStruct((n, 1), jnp.float32),
        grid=grid,
        in_specs=[pl.BlockSpec((tile_n, tile_c), lambda i, k: (i, k))],
        out_specs=pl.BlockSpec((tile_n, 1), lambda i, k: (i, 0)),
        scratch_shapes=[
            pltpu.VMEM((tile_n, 1), jnp.float32),   # running max
            pltpu.VMEM((tile_n, 1), jnp.float32),   # running sum of exp
        ],
        compiler_params=pltpu.CompilerParams(
            dimension_semantics=("parallel", "arbitrary"),
            vmem_limit_bytes=vmem_limit,
        ),
        cost_estimate=cost,
    )(x)
    return out[:, 0]


def cross_entropy_loss(prediction, target):
    """prediction: (N, C) logits (f32 or bf16); target: (N,) int class indices.
    Returns scalar f32 mean NLL, matching nn.CrossEntropyLoss() defaults."""
    n, _ = prediction.shape
    tgt = target.astype(jnp.int32)
    lse = _row_logsumexp(prediction)                                        # (N,) f32
    tgt_logit = jnp.take_along_axis(prediction, tgt[:, None], axis=-1)      # tiny HBM gather
    tgt_logit = tgt_logit[:, 0].astype(jnp.float32)
    return jnp.sum(lse - tgt_logit) / jnp.float32(n)


def _reference(pred, tgt):
    pred = pred.astype(jnp.float32)
    return jnp.mean(
        jax.nn.logsumexp(pred, axis=-1)
        - jnp.take_along_axis(pred, tgt[:, None].astype(jnp.int32), axis=-1)[:, 0]
    )


if __name__ == "__main__":
    key = jax.random.PRNGKey(0)
    k1, k2, k3, k4, k5, k6 = jax.random.split(key, 6)

    # 1) small shape consistent with the module's forward: (N, C) logits + (N,) class targets
    N, C = 8, 32
    prediction = jax.random.normal(k1, (N, C), dtype=jnp.float32)
    target = jax.random.randint(k2, (N,), 0, C, dtype=jnp.int32)
    loss = cross_entropy_loss(prediction, target)
    jax.block_until_ready(loss)
    ref = _reference(prediction, target)
    assert jnp.allclose(loss, ref, atol=1e-5, rtol=1e-5), (loss, ref)

    # 2) ragged batch + non-128 class dim (single full-width class tile, ragged batch tail)
    p2 = jax.random.normal(k3, (10, 48), dtype=jnp.float32)
    t2 = jax.random.randint(k4, (10,), 0, 48, dtype=jnp.int32)
    loss2 = cross_entropy_loss(p2, t2)
    jax.block_until_ready(loss2)
    ref2 = _reference(p2, t2)
    assert jnp.allclose(loss2, ref2, atol=1e-5, rtol=1e-5), (loss2, ref2)

    # 3) C > 128 and not tile-aligned: exercises the multi-tile online logsumexp and the
    #    in-kernel class-tail mask (no padded copy of the logits).
    p3 = jax.random.normal(k5, (16, 200), dtype=jnp.float32)
    t3 = jax.random.randint(k6, (16,), 0, 200, dtype=jnp.int32)
    loss3 = cross_entropy_loss(p3, t3)
    jax.block_until_ready(loss3)
    ref3 = _reference(p3, t3)
    assert jnp.allclose(loss3, ref3, atol=1e-5, rtol=1e-5), (loss3, ref3)

    # 4) bf16 logits stay bf16 on the wire; upcast happens in-kernel.
    p4 = jax.random.normal(k1, (12, 160), dtype=jnp.bfloat16)
    t4 = jax.random.randint(k2, (12,), 0, 160, dtype=jnp.int32)
    loss4 = cross_entropy_loss(p4, t4)
    jax.block_until_ready(loss4)
    ref4 = _reference(p4, t4)
    assert jnp.allclose(loss4, ref4, atol=1e-4, rtol=1e-4), (loss4, ref4)

    print("KERNEL_OK")
</pallas_src>

<mosaic_0001>
module attributes {stable_mosaic.version = 11 : i64} {
  func.func @_lse_kernel(%arg0: i32, %arg1: i32, %arg2: memref<8x32xf32, #tpu.memory_space<vmem>>, %arg3: memref<8x1xf32, #tpu.memory_space<vmem>>, %arg4: memref<8x1xf32, #tpu.memory_space<vmem>>, %arg5: memref<8x1xf32, #tpu.memory_space<vmem>>) attributes {dimension_semantics = [#tpu.dimension_semantics<parallel>, #tpu.dimension_semantics<arbitrary>], iteration_bounds = array<i64: 1, 1>, scalar_prefetch = 0 : i64, scratch_operands = 2 : i64, tpu.core_type = #tpu.core_type<tc>, window_params = [{transform_indices = @transform_0, window_bounds = array<i64: 8, 32>}, {transform_indices = @transform_1, window_bounds = array<i64: 8, 1>}]} {
    %c0_i32 = arith.constant 0 : i32
    %0 = arith.cmpi eq, %arg1, %c0_i32 : i32
    %1 = arith.extui %0 : i1 to i32
    %c0_i32_0 = arith.constant 0 : i32
    %2 = arith.cmpi ne, %1, %c0_i32_0 : i32
    scf.if %2 {
      %cst_13 = arith.constant -1.000000e+30 : f32
      %23 = vector.broadcast %cst_13 : f32 to vector<8x1xf32>
      %c0_14 = arith.constant 0 : index
      %c0_15 = arith.constant 0 : index
      %24 = vector.load %arg4[%c0_14, %c0_15] : memref<8x1xf32, #tpu.memory_space<vmem>>, vector<8x1xf32>
      tpu.vector_store %arg4[%c0_14, %c0_15], %23 {strides = array<i32>} : memref<8x1xf32, #tpu.memory_space<vmem>>, vector<8x1xf32>,
      %cst_16 = arith.constant 0.000000e+00 : f32
      %25 = vector.broadcast %cst_16 : f32 to vector<8x1xf32>
      %c0_17 = arith.constant 0 : index
      %c0_18 = arith.constant 0 : index
      %26 = vector.load %arg5[%c0_17, %c0_18] : memref<8x1xf32, #tpu.memory_space<vmem>>, vector<8x1xf32>
      tpu.vector_store %arg5[%c0_17, %c0_18], %25 {strides = array<i32>} : memref<8x1xf32, #tpu.memory_space<vmem>>, vector<8x1xf32>,
    } else {
    }
    %c0 = arith.constant 0 : index
    %c0_1 = arith.constant 0 : index
    %3 = vector.load %arg2[%c0, %c0_1] : memref<8x32xf32, #tpu.memory_space<vmem>>, vector<8x32xf32>
    %cst = arith.constant dense<0xFF800000> : vector<8xf32>
    %4 = vector.multi_reduction <maximumf>, %3, %cst [1] : vector<8x32xf32> to vector<8xf32>
    %5 = vector.shape_cast %4 : vector<8xf32> to vector<8x1xf32>
    %c0_2 = arith.constant 0 : index
    %c0_3 = arith.constant 0 : index
    %6 = vector.load %arg4[%c0_2, %c0_3] : memref<8x1xf32, #tpu.memory_space<vmem>>, vector<8x1xf32>
    %7 = arith.maximumf %6, %5 : vector<8x1xf32>
    %8 = vector.broadcast %7 : vector<8x1xf32> to vector<8x32xf32>
    %9 = arith.subf %3, %8 : vector<8x32xf32>
    %10 = math.exp %9 : vector<8x32xf32>
    %cst_4 = arith.constant dense<0.000000e+00> : vector<8xf32>
    %11 = vector.multi_reduction <add>, %10, %cst_4 [1] : vector<8x32xf32> to vector<8xf32>
    %12 = vector.shape_cast %11 : vector<8xf32> to vector<8x1xf32>
    %13 = arith.subf %6, %7 : vector<8x1xf32>
    %14 = math.exp %13 : vector<8x1xf32>
    %c0_5 = arith.constant 0 : index
    %c0_6 = arith.constant 0 : index
    %15 = vector.load %arg5[%c0_5, %c0_6] : memref<8x1xf32, #tpu.memory_space<vmem>>, vector<8x1xf32>
    %16 = arith.mulf %14, %15 : vector<8x1xf32>
    %17 = arith.addf %16, %12 : vector<8x1xf32>
    %c0_7 = arith.constant 0 : index
    %c0_8 = arith.constant 0 : index
    %18 = vector.load %arg5[%c0_7, %c0_8] : memref<8x1xf32, #tpu.memory_space<vmem>>, vector<8x1xf32>
    tpu.vector_store %arg5[%c0_7, %c0_8], %17 {strides = array<i32>} : memref<8x1xf32, #tpu.memory_space<vmem>>, vector<8x1xf32>,
    %c0_9 = arith.constant 0 : index
    %c0_10 = arith.constant 0 : index
    %19 = vector.load %arg4[%c0_9, %c0_10] : memref<8x1xf32, #tpu.memory_space<vmem>>, vector<8x1xf32>
    tpu.vector_store %arg4[%c0_9, %c0_10], %7 {strides = array<i32>} : memref<8x1xf32, #tpu.memory_space<vmem>>, vector<8x1xf32>,
    %c0_i32_11 = arith.constant 0 : i32
    %20 = arith.cmpi eq, %arg1, %c0_i32_11 : i32
    %21 = arith.extui %20 : i1 to i32
    %c0_i32_12 = arith.constant 0 : i32
    %22 = arith.cmpi ne, %21, %c0_i32_12 : i32
    scf.if %22 {
      %c0_13 = arith.constant 0 : index
      %c0_14 = arith.constant 0 : index
      %23 = vector.load %arg4[%c0_13, %c0_14] : memref<8x1xf32, #tpu.memory_space<vmem>>, vector<8x1xf32>
      %c0_15 = arith.constant 0 : index
      %c0_16 = arith.constant 0 : index
      %24 = vector.load %arg5[%c0_15, %c0_16] : memref<8x1xf32, #tpu.memory_space<vmem>>, vector<8x1xf32>
      %25 = math.log %24 : vector<8x1xf32>
      %26 = arith.addf %23, %25 : vector<8x1xf32>
      %c0_17 = arith.constant 0 : index
      %c0_18 = arith.constant 0 : index
      %27 = vector.load %arg3[%c0_17, %c0_18] : memref<8x1xf32, #tpu.memory_space<vmem>>, vector<8x1xf32>
      tpu.vector_store %arg3[%c0_17, %c0_18], %26 {strides = array<i32>} : memref<8x1xf32, #tpu.memory_space<vmem>>, vector<8x1xf32>,
    } else {
    }
    return
  }
  func.func @transform_0(%arg0: i32, %arg1: i32) -> (i32, i32) {
    %c0_i32 = arith.constant 0 : i32
    return %arg0, %arg1 : i32, i32
  }
  func.func @transform_1(%arg0: i32, %arg1: i32) -> (i32, i32) {
    %c0_i32 = arith.constant 0 : i32
    %c0_i32_0 = arith.constant 0 : i32
    return %arg0, %c0_i32 : i32, i32
  }
}

</mosaic_0001>

<llo_original>
// kernel: tpu_custom_call.1
$region0: #{tpu_custom_call.1}
  #allocation0 [shape = 'u32[]', space=smem, size = 0x4, offset = 0x4, fixed_abs, tag = 'smem constant byte address 0x4 - core index']
  #allocation1 [shape = 'u32[144,128]{1,0:T(1,128)}', space=vmem, size = 0x12000, scoped, tag = 'internal scratch']
  #allocation2 [shape = 'f32[8,1]{1,0:T(8,128)}', space=vmem, size = 0x1000, scoped, tag = 'scratch operand']
  #allocation3 [shape = 'f32[8,1]{1,0:T(8,128)}', space=vmem, size = 0x1000, scoped, tag = 'scratch operand']
  %s0 = inlined_call_operand.hbm [shape: f32[8,32], index: 0, kind: input, shape index: {}]
  %s1 = inlined_call_operand.hbm [shape: f32[8,1], index: 1, kind: output, shape index: {}]
  %s2 = sld [smem:[#allocation0]]
  $region26: #{tpu_custom_call.1} parent=0
    _
  %s4 = ssub.s32 1, %s2
  %s5 = scalar_select 0, %s4, %s2
  $region1: #{tpu_custom_call.1} parent=0
    #allocation4 [shape = 'u8[4096]{0}', space=vmem, size = 0x1000, scoped, tag = 'input window, operand 0, single buffered']
    #allocation5 [shape = 's32[1]{0}', space=sflag, size = 0x4, scoped, tag = 'scoped memory for tpu_custom_call.1']
    #allocation6 [shape = 's32[1]{0}', space=sflag, size = 0x4, scoped, tag = 'scoped memory for tpu_custom_call.1']
    #allocation7 [shape = 'u8[4096]{0}', space=vmem, size = 0x1000, scoped, tag = 'output window, operand 0, single buffered']
    %6 = vsyncpa [#allocation5], 0
    %7 = vsyncpa [#allocation6], 0
    // Predicated region
    $region2: #{tpu_custom_call.1} parent=1 // pred_check
      _
    $region3: #{tpu_custom_call.1} parent=1 // pred_check_branch
      %9 = sbr.rel (0) target = $region5
    $region4: #{tpu_custom_call.1} parent=1 // pred_region
      %s11 = ssub.s32 128, 128
      %12 = vsyncadd [#allocation5], %s11
      %s14 = sshll.u32 [#allocation4], 4
      %s15 = int_to_ptr.vmem [resolvable:$true] %s14
      %17 = dma.hbm_to_vmem [thread:$0]  %s0, 128, %s15, [#allocation5]
    $region5: #{tpu_custom_call.1} parent=1 // pred_fallthru
      _
    // Predicated region
    $region6: #{tpu_custom_call.1} parent=1 // pred_check
      _
    $region7: #{tpu_custom_call.1} parent=1 // pred_check_branch
      %19 = sbr.rel (0) target = $region9
    $region8: #{tpu_custom_call.1} parent=1 // pred_region
      %20 = dma.done [#allocation5], 128
    $region9: #{tpu_custom_call.1} parent=1 // pred_fallthru
      _
    %p21 = scmp.eq.s32.totalorder 0, 0
    // Predicated region
    $region10: #{tpu_custom_call.1} parent=1 // pred_check
      %p22 = pneg %p21
    $region11: #{tpu_custom_call.1} parent=1 // pred_check_branch
      %24 = sbr.rel (%p22) target = $region13
    $region12: #{tpu_custom_call.1} parent=1 // pred_region
      %vm25 = vcmask 7168
      %26 = vst.msk [vmem:[#allocation2] sm:$0xff] %vm25, -1e+30
      %27 = vst.msk [vmem:[#allocation3] sm:$0xff] %vm25, 0.0
    $region13: #{tpu_custom_call.1} parent=1 // pred_fallthru
      _
    %v28 = vld [vmem:[#allocation4] sm:$0xff]
    %vm29 = vcmask 261120
    %v30 = vsel %vm29, %v28, -inf
    %31 = vmax.xlane.f32.xlu0 %v30
    %v32 = vpop.xlane.xlu0 %31
    %v33 = vld [vmem:[#allocation2] sm:$0xff]
    %v34 = vmax.f32 %v33, %v32
    %36 = vset.pattern.permute.xlu0 0
    %37 = vperm.xlu0 %36, %v34
    %v38 = vpop.permute.xlu0 %37
    %v40 = vsub.f32 %v28, %v38
    %v41 = vmul.f32 %v40, 1.442695
    %v42 = vpow.pop %v41
    %v43 = vsel %vm29, %v42, 0.0
    %44 = vadd.xlane.f32.xlu0 %v43
    %v45 = vpop.xlane.xlu0 %44
    %v46 = vsub.f32 %v33, %v34
    %v47 = vmul.f32 %v46, 1.442695
    %v48 = vpow.pop %v47
    %v49 = vld [vmem:[#allocation3] sm:$0xff]
    %v50 = vmul.f32 %v48, %v49
    %v51 = vadd.f32 %v50, %v45
    %vm52 = vcmask 7168
    %53 = vst.msk [vmem:[#allocation3] sm:$0xff] %vm52, %v51
    %54 = vst.msk [vmem:[#allocation2] sm:$0xff] %vm52, %v34
    // Predicated region
    $region14: #{tpu_custom_call.1} parent=1 // pred_check
      %p55 = pneg %p21
    $region15: #{tpu_custom_call.1} parent=1 // pred_check_branch
      %57 = sbr.rel (%p55) target = $region17
    $region16: #{tpu_custom_call.1} parent=1 // pred_region
      %v58 = vld [vmem:[#allocation2] sm:$0xff]
      %v59 = vld [vmem:[#allocation3] sm:$0xff]
      %v60 = vlog2.pop %v59
      %v61 = vmul.f32 %v60, 0.6931472
      %v62 = vadd.f32 %v58, %v61
      %63 = vst.msk [vmem:[#allocation7] sm:$0xff] %vm52, %v62
    $region17: #{tpu_custom_call.1} parent=1 // pred_fallthru
      _
    // Predicated region
    $region18: #{tpu_custom_call.1} parent=1 // pred_check
      _
    $region19: #{tpu_custom_call.1} parent=1 // pred_check_branch
      %65 = sbr.rel (0) target = $region21
    $region20: #{tpu_custom_call.1} parent=1 // pred_region
      %s67 = ssub.s32 128, 128
      %68 = vsyncadd [#allocation6], %s67
      %s70 = sshll.u32 [#allocation7], 4
      %s71 = int_to_ptr.vmem [resolvable:$true] %s70
      %73 = dma.vmem_to_hbm [thread:$0]  %s71, 128, %s1, [#allocation6]
    $region21: #{tpu_custom_call.1} parent=1 // pred_fallthru
      _
    // Predicated region
    $region22: #{tpu_custom_call.1} parent=1 // pred_check
      _
    $region23: #{tpu_custom_call.1} parent=1 // pred_check_branch
      %75 = sbr.rel (0) target = $region25
    $region24: #{tpu_custom_call.1} parent=1 // pred_region
      %76 = dma.done [#allocation6], 128
    $region25: #{tpu_custom_call.1} parent=1 // pred_fallthru
      _
    %77 = vsyncpa [#allocation5], 1
    %78 = vsyncpa [#allocation6], 1

</llo_original>
